<compile_context>
chip_gen: v5e
topology: v5e:2x2
jax: 0.10.0
libtpu: 0.0.40
codegen_flags: <defaults>
</compile_context>

<pallas_src>
import functools

import jax
import jax.numpy as jnp
from jax import lax
from jax.experimental import pallas as pl
from jax.experimental.pallas import tpu as pltpu

_VMEM_LIMIT = 32 * 1024 * 1024   # raise v5e's 16 MiB scoped default; safe on v7x
_GP_GROUP = 8                    # features summed in registers per acc update


def _round_up(x: int, m: int) -> int:
    return (x + m - 1) // m * m


def _choose_tile(n: int, align: int, max_tile: int) -> int:
    """Largest tile (multiple of `align`, <= max_tile) with ~<=25% padding."""
    n_al = _round_up(n, align)
    if n_al <= max_tile:
        return n_al                       # whole (aligned) dim in one block
    t = max_tile
    while t > align:
        if _round_up(n, t) - n <= max(n // 4, align):
            return t
        t //= 2
    return align


def _split_for_megacore(N, M, tn, tm):
    """v7x shards the parallel grid axes over 2 TensorCores; avoid a 1x1 (i,j)
    grid when one axis can be split without adding padding.  Harmless on the
    single-TC v5e/v6e."""
    if _round_up(N, tn) == tn and _round_up(M, tm) == tm:
        if tm >= 256 and tm % 256 == 0:
            tm //= 2
        elif tn >= 16 and tn % 16 == 0:
            tn //= 2
    return tn, tm


# --------------------------------------------------------------------------
# p == 2 : MXU path
# --------------------------------------------------------------------------
def _dist_p2_kernel(x1_ref, x2_ref, asq_ref, bsq_ref, o_ref, acc_ref):
    k = pl.program_id(2)

    @pl.when(k == 0)
    def _init():
        acc_ref[...] = jnp.zeros_like(acc_ref)

    # Pure-MXU inner loop: accumulate only the cross term x1 @ x2^T.
    acc_ref[...] += lax.dot_general(
        x1_ref[...], x2_ref[...],
        dimension_numbers=(((1,), (1,)), ((), ())),
        preferred_element_type=jnp.float32,
    )

    @pl.when(k == pl.num_programs(2) - 1)
    def _finalize():
        # dist^2 = ||a||^2 + ||b||^2 - 2 a.b; clamp guards rounding for
        # near-duplicate rows (same tradeoff as torch.cdist's mm mode).
        s = asq_ref[...] + bsq_ref[...] - 2.0 * acc_ref[...]
        o_ref[...] = jnp.sqrt(jnp.maximum(s, 0.0)).astype(o_ref.dtype)


def _distances_p2(x1p, x2p, x1_sq, x2_sq, out_dtype, tn, tm, tk):
    Np, Dp = x1p.shape
    Mp, _ = x2p.shape
    grid = (Np // tn, Mp // tm, Dp // tk)
    return pl.pallas_call(
        _dist_p2_kernel,
        out_shape=jax.ShapeDtypeStruct((Np, Mp), out_dtype),
        grid_spec=pltpu.PrefetchScalarGridSpec(
            num_scalar_prefetch=0,
            grid=grid,
            in_specs=[
                pl.BlockSpec((tn, tk), lambda i, j, k: (i, k)),   # x1 tile
                pl.BlockSpec((tm, tk), lambda i, j, k: (j, k)),   # x2 tile
                pl.BlockSpec((tn, 1), lambda i, j, k: (i, 0)),    # ||x1||^2 col
                pl.BlockSpec((1, tm), lambda i, j, k: (0, j)),    # ||x2||^2 row
            ],
            out_specs=pl.BlockSpec((tn, tm), lambda i, j, k: (i, j)),
            scratch_shapes=[pltpu.VMEM((tn, tm), jnp.float32)],
        ),
        compiler_params=pltpu.CompilerParams(
            dimension_semantics=("parallel", "parallel", "arbitrary"),
            vmem_limit_bytes=_VMEM_LIMIT,
        ),
    )(x1p, x2p, x1_sq, x2_sq)


# --------------------------------------------------------------------------
# general p : VPU rank-1-update path (no 3-D intermediate, no lane reduce)
# --------------------------------------------------------------------------
def _dist_gp_kernel(x1_ref, x2t_ref, o_ref, acc_ref, *, p, tk):
    k = pl.program_id(2)

    @pl.when(k == 0)
    def _init():
        acc_ref[...] = jnp.zeros_like(acc_ref)

    # For each feature d in this chunk:  acc[i, j] += |x1[i, d] - x2[j, d]|**p
    # x1 column (tn, 1) broadcasts along lanes, x2^T row (1, tm) along
    # sublanes; the accumulator is RMW'd once per _GP_GROUP features.
    for d0 in range(0, tk, _GP_GROUP):
        partial = None
        for d in range(d0, d0 + _GP_GROUP):
            col = x1_ref[:, d:d + 1].astype(jnp.float32)    # (tn, 1)
            row = x2t_ref[d:d + 1, :].astype(jnp.float32)   # (1, tm)
            t = jnp.abs(col - row)
            if p != 1:
                t = t ** p
            partial = t if partial is None else partial + t
        acc_ref[...] += partial

    @pl.when(k == pl.num_programs(2) - 1)
    def _finalize():
        s = acc_ref[...]
        if p == 1:
            o_ref[...] = s.astype(o_ref.dtype)
        else:
            o_ref[...] = (s ** (1.0 / p)).astype(o_ref.dtype)


def _distances_gp(x1p, x2t, p, out_dtype, tn, tm, tk):
    Np, Dp = x1p.shape
    _, Mp = x2t.shape
    grid = (Np // tn, Mp // tm, Dp // tk)
    kernel = functools.partial(_dist_gp_kernel, p=p, tk=tk)
    return pl.pallas_call(
        kernel,
        out_shape=jax.ShapeDtypeStruct((Np, Mp), out_dtype),
        grid_spec=pltpu.PrefetchScalarGridSpec(
            num_scalar_prefetch=0,
            grid=grid,
            in_specs=[
                pl.BlockSpec((tn, tk), lambda i, j, k: (i, k)),   # x1 (d on lanes)
                pl.BlockSpec((tk, tm), lambda i, j, k: (k, j)),   # x2^T (m on lanes)
            ],
            out_specs=pl.BlockSpec((tn, tm), lambda i, j, k: (i, j)),
            scratch_shapes=[pltpu.VMEM((tn, tm), jnp.float32)],
        ),
        compiler_params=pltpu.CompilerParams(
            dimension_semantics=("parallel", "parallel", "arbitrary"),
            vmem_limit_bytes=_VMEM_LIMIT,
        ),
    )(x1p, x2t)


# --------------------------------------------------------------------------
# wrapper (== Distances(p).forward)
# --------------------------------------------------------------------------
def distances(input1, input2, p: int = 2):
    """Pairwise Lp distances between rows of input1 (N, D) and input2 (M, D)."""
    N, D = input1.shape
    M, D2 = input2.shape
    assert D == D2, "feature dims must match"
    out_dtype = input1.dtype

    if p == 2:
        # MXU path: big tiles amortize step overhead and HBM re-fetch.
        tn = _choose_tile(N, 8, 512)
        tm = _choose_tile(M, 128, 512)
        tk = _choose_tile(D, 128, 512)
    else:
        # VPU path: compute-bound; moderate tiles keep register pressure sane
        # while still cutting grid steps / x2 re-streaming vs tiny tiles.
        tn = _choose_tile(N, 8, 128)
        tm = _choose_tile(M, 128, 256)
        tk = 128   # feature chunk is statically unrolled in the kernel

    tn, tm = _split_for_megacore(N, M, tn, tm)

    Np, Mp, Dp = _round_up(N, tn), _round_up(M, tm), _round_up(D, tk)

    # Zero padding contributes |0-0|^p = 0 to every real distance; padded
    # rows/cols are sliced away below.  Skip the pad copies when not needed.
    x1p = input1 if (Np, Dp) == (N, D) else jnp.pad(input1, ((0, Np - N), (0, Dp - D)))
    x2p = input2 if (Mp, Dp) == (M, D) else jnp.pad(input2, ((0, Mp - M), (0, Dp - D)))

    if p == 2:
        x1_sq = jnp.sum(x1p.astype(jnp.float32) ** 2, axis=-1, keepdims=True)  # (Np, 1)
        x2_sq = jnp.sum(x2p.astype(jnp.float32) ** 2, axis=-1)[None, :]        # (1, Mp)
        out = _distances_p2(x1p, x2p, x1_sq, x2_sq, out_dtype, tn, tm, tk)
    else:
        out = _distances_gp(x1p, jnp.transpose(x2p), p, out_dtype, tn, tm, tk)

    return out[:N, :M]


if __name__ == "__main__":
    key = jax.random.PRNGKey(0)
    k1, k2, k3, k4 = jax.random.split(key, 4)

    # Small shapes implied by the module's forward: (N, D) x (M, D) -> (N, M).
    N, M, D = 8, 16, 32
    x1 = jax.random.normal(k1, (N, D), dtype=jnp.float32)
    x2 = jax.random.normal(k2, (M, D), dtype=jnp.float32)

    # p = 2 (module default): MXU path.
    out2 = jax.block_until_ready(distances(x1, x2, 2))
    ref2 = jnp.sqrt(jnp.sum((x1[:, None, :] - x2[None, :, :]) ** 2, axis=-1))
    assert out2.shape == (N, M)
    assert jnp.allclose(out2, ref2, atol=1e-4, rtol=1e-4), "p=2 mismatch vs reference"

    # p = 1: VPU rank-1-update path.
    out1 = jax.block_until_ready(distances(x1, x2, 1))
    ref1 = jnp.sum(jnp.abs(x1[:, None, :] - x2[None, :, :]), axis=-1)
    assert out1.shape == (N, M)
    assert jnp.allclose(out1, ref1, atol=1e-4, rtol=1e-4), "p=1 mismatch vs reference"

    # p = 2 with a multi-block (j, k) grid: exercises the resident accumulator
    # across the D reduction and the megacore j-split.
    N2, M2, D2 = 16, 256, 1536
    y1 = jax.random.normal(k3, (N2, D2), dtype=jnp.float32)
    y2 = jax.random.normal(k4, (M2, D2), dtype=jnp.float32)
    outb = jax.block_until_ready(distances(y1, y2, 2))
    refb = jnp.sqrt(jnp.sum((y1[:, None, :] - y2[None, :, :]) ** 2, axis=-1))
    assert outb.shape == (N2, M2)
    assert jnp.allclose(outb, refb, atol=1e-3, rtol=1e-3), "tiled p=2 mismatch vs reference"

    print("KERNEL_OK")
</pallas_src>

<mosaic_0001>
module attributes {stable_mosaic.version = 11 : i64} {
  func.func @_dist_p2_kernel(%arg0: i32, %arg1: i32, %arg2: i32, %arg3: memref<8x128xf32, #tpu.memory_space<vmem>>, %arg4: memref<128x128xf32, #tpu.memory_space<vmem>>, %arg5: memref<8x1xf32, #tpu.memory_space<vmem>>, %arg6: memref<1x128xf32, #tpu.memory_space<vmem>>, %arg7: memref<8x128xf32, #tpu.memory_space<vmem>>, %arg8: memref<8x128xf32, #tpu.memory_space<vmem>>) attributes {dimension_semantics = [#tpu.dimension_semantics<parallel>, #tpu.dimension_semantics<parallel>, #tpu.dimension_semantics<arbitrary>], iteration_bounds = array<i64: 1, 1, 1>, scalar_prefetch = 0 : i64, scratch_operands = 1 : i64, tpu.core_type = #tpu.core_type<tc>, window_params = [{transform_indices = @transform_0, window_bounds = array<i64: 8, 128>}, {transform_indices = @transform_1, window_bounds = array<i64: 128, 128>}, {transform_indices = @transform_2, window_bounds = array<i64: 8, 1>}, {transform_indices = @transform_3, window_bounds = array<i64: 1, 128>}, {transform_indices = @transform_4, window_bounds = array<i64: 8, 128>}]} {
    %c0_i32 = arith.constant 0 : i32
    %0 = arith.cmpi eq, %arg2, %c0_i32 : i32
    %1 = arith.extui %0 : i1 to i32
    %c0_i32_0 = arith.constant 0 : i32
    %2 = arith.cmpi ne, %1, %c0_i32_0 : i32
    scf.if %2 {
      %cst_10 = arith.constant 0.000000e+00 : f32
      %12 = vector.broadcast %cst_10 : f32 to vector<8x128xf32>
      %c0_11 = arith.constant 0 : index
      %c0_12 = arith.constant 0 : index
      %13 = vector.load %arg8[%c0_11, %c0_12] : memref<8x128xf32, #tpu.memory_space<vmem>>, vector<8x128xf32>
      tpu.vector_store %arg8[%c0_11, %c0_12], %12 {strides = array<i32>} : memref<8x128xf32, #tpu.memory_space<vmem>>, vector<8x128xf32>,
    } else {
    }
    %c0 = arith.constant 0 : index
    %c0_1 = arith.constant 0 : index
    %3 = vector.load %arg8[%c0, %c0_1] : memref<8x128xf32, #tpu.memory_space<vmem>>, vector<8x128xf32>
    %c0_2 = arith.constant 0 : index
    %c0_3 = arith.constant 0 : index
    %4 = vector.load %arg3[%c0_2, %c0_3] : memref<8x128xf32, #tpu.memory_space<vmem>>, vector<8x128xf32>
    %c0_4 = arith.constant 0 : index
    %c0_5 = arith.constant 0 : index
    %5 = vector.load %arg4[%c0_4, %c0_5] : memref<128x128xf32, #tpu.memory_space<vmem>>, vector<128x128xf32>
    %cst = arith.constant dense<0.000000e+00> : vector<8x128xf32>
    %6 = tpu.matmul %4, %5, %cst {dimension_numbers = #tpu.dot_dimension_numbers<[1], [1], [0], [0], [0, 0, 1, 0], [], []>} : vector<8x128xf32>, vector<128x128xf32>, vector<8x128xf32> -> vector<8x128xf32>
    %7 = arith.addf %3, %6 : vector<8x128xf32>
    %c0_6 = arith.constant 0 : index
    %c0_7 = arith.constant 0 : index
    %8 = vector.load %arg8[%c0_6, %c0_7] : memref<8x128xf32, #tpu.memory_space<vmem>>, vector<8x128xf32>
    tpu.vector_store %arg8[%c0_6, %c0_7], %7 {strides = array<i32>} : memref<8x128xf32, #tpu.memory_space<vmem>>, vector<8x128xf32>,
    %c0_i32_8 = arith.constant 0 : i32
    %9 = arith.cmpi eq, %arg2, %c0_i32_8 : i32
    %10 = arith.extui %9 : i1 to i32
    %c0_i32_9 = arith.constant 0 : i32
    %11 = arith.cmpi ne, %10, %c0_i32_9 : i32
    scf.if %11 {
      %c0_10 = arith.constant 0 : index
      %c0_11 = arith.constant 0 : index
      %12 = vector.load %arg5[%c0_10, %c0_11] : memref<8x1xf32, #tpu.memory_space<vmem>>, vector<8x1xf32>
      %c0_12 = arith.constant 0 : index
      %c0_13 = arith.constant 0 : index
      %13 = vector.load %arg6[%c0_12, %c0_13] : memref<1x128xf32, #tpu.memory_space<vmem>>, vector<1x128xf32>
      %14 = vector.broadcast %12 : vector<8x1xf32> to vector<8x128xf32>
      %15 = vector.broadcast %13 : vector<1x128xf32> to vector<8x128xf32>
      %16 = arith.addf %14, %15 : vector<8x128xf32>
      %c0_14 = arith.constant 0 : index
      %c0_15 = arith.constant 0 : index
      %17 = vector.load %arg8[%c0_14, %c0_15] : memref<8x128xf32, #tpu.memory_space<vmem>>, vector<8x128xf32>
      %cst_16 = arith.constant 2.000000e+00 : f32
      %18 = vector.broadcast %cst_16 : f32 to vector<8x128xf32>
      %19 = arith.mulf %18, %17 : vector<8x128xf32>
      %20 = arith.subf %16, %19 : vector<8x128xf32>
      %cst_17 = arith.constant 0.000000e+00 : f32
      %21 = vector.broadcast %cst_17 : f32 to vector<8x128xf32>
      %22 = arith.maximumf %20, %21 : vector<8x128xf32>
      %23 = math.sqrt %22 : vector<8x128xf32>
      %c0_18 = arith.constant 0 : index
      %c0_19 = arith.constant 0 : index
      %24 = vector.load %arg7[%c0_18, %c0_19] : memref<8x128xf32, #tpu.memory_space<vmem>>, vector<8x128xf32>
      tpu.vector_store %arg7[%c0_18, %c0_19], %23 {strides = array<i32>} : memref<8x128xf32, #tpu.memory_space<vmem>>, vector<8x128xf32>,
    } else {
    }
    return
  }
  func.func @transform_0(%arg0: i32, %arg1: i32, %arg2: i32) -> (i32, i32) {
    %c0_i32 = arith.constant 0 : i32
    return %arg0, %arg2 : i32, i32
  }
  func.func @transform_1(%arg0: i32, %arg1: i32, %arg2: i32) -> (i32, i32) {
    %c0_i32 = arith.constant 0 : i32
    return %arg1, %arg2 : i32, i32
  }
  func.func @transform_2(%arg0: i32, %arg1: i32, %arg2: i32) -> (i32, i32) {
    %c0_i32 = arith.constant 0 : i32
    %c0_i32_0 = arith.constant 0 : i32
    return %arg0, %c0_i32 : i32, i32
  }
  func.func @transform_3(%arg0: i32, %arg1: i32, %arg2: i32) -> (i32, i32) {
    %c0_i32 = arith.constant 0 : i32
    %c0_i32_0 = arith.constant 0 : i32
    return %c0_i32, %arg1 : i32, i32
  }
  func.func @transform_4(%arg0: i32, %arg1: i32, %arg2: i32) -> (i32, i32) {
    %c0_i32 = arith.constant 0 : i32
    return %arg0, %arg1 : i32, i32
  }
}

</mosaic_0001>

<llo_original>
// kernel: tpu_custom_call.1
$region0: #{tpu_custom_call.1}
  #allocation0 [shape = 'u32[]', space=smem, size = 0x4, offset = 0x4, fixed_abs, tag = 'smem constant byte address 0x4 - core index']
  #allocation1 [shape = 'u32[72,128]{1,0:T(1,128)}', space=vmem, size = 0x9000, scoped, tag = 'internal scratch']
  #allocation2 [shape = 'f32[8,128]{1,0:T(8,128)}', space=vmem, size = 0x1000, scoped, tag = 'scratch operand']
  %s0 = inlined_call_operand.vmem [shape: f32[8,128], index: 0, kind: input, shape index: {}]
  %s1 = inlined_call_operand.hbm [shape: f32[128,128], index: 1, kind: input, shape index: {}]
  %s2 = inlined_call_operand.vmem [shape: f32[8,1], index: 2, kind: input, shape index: {}]
  %s3 = inlined_call_operand.vmem [shape: f32[1,128], index: 3, kind: input, shape index: {}]
  %s4 = inlined_call_operand.hbm [shape: f32[8,128], index: 4, kind: output, shape index: {}]
  %s5 = sld [smem:[#allocation0]]
  $region38: #{tpu_custom_call.1} parent=0
    _
  %s7 = ssub.s32 1, %s5
  %s8 = scalar_select 0, %s7, %s5
  $region1: #{tpu_custom_call.1} parent=0
    #allocation3 [shape = 'u8[65536]{0}', space=vmem, size = 0x10000, scoped, tag = 'input window, operand 1, single buffered']
    #allocation4 [shape = 's32[1]{0}', space=sflag, size = 0x4, scoped, tag = 'scoped memory for tpu_custom_call.1']
    #allocation5 [shape = 's32[1]{0}', space=sflag, size = 0x4, scoped, tag = 'scoped memory for tpu_custom_call.1']
    #allocation6 [shape = 'u8[4096]{0}', space=vmem, size = 0x1000, scoped, tag = 'output window, operand 0, single buffered']
    %9 = vsyncpa [#allocation4], 0
    %10 = vsyncpa [#allocation5], 0
    // Predicated region
    $region2: #{tpu_custom_call.1} parent=1 // pred_check
      _
    $region3: #{tpu_custom_call.1} parent=1 // pred_check_branch
      %12 = sbr.rel (0) target = $region5
    $region4: #{tpu_custom_call.1} parent=1 // pred_region
      _
    $region5: #{tpu_custom_call.1} parent=1 // pred_fallthru
      _
    // Predicated region
    $region6: #{tpu_custom_call.1} parent=1 // pred_check
      _
    $region7: #{tpu_custom_call.1} parent=1 // pred_check_branch
      %14 = sbr.rel (0) target = $region9
    $region8: #{tpu_custom_call.1} parent=1 // pred_region
      %16 = vsyncadd [#allocation4], 0
      %s17 = sshll.u32 %s1, 4
      %s18 = int_to_ptr.hbm [resolvable:$true] %s17
      %s19 = sshll.u32 [#allocation3], 4
      %s20 = int_to_ptr.vmem [resolvable:$true] %s19
      %25 = dma.hbm_to_vmem [thread:$0]  %s18, 2048, %s20, [#allocation4], 128, 128, 8
    $region9: #{tpu_custom_call.1} parent=1 // pred_fallthru
      _
    // Predicated region
    $region10: #{tpu_custom_call.1} parent=1 // pred_check
      _
    $region11: #{tpu_custom_call.1} parent=1 // pred_check_branch
      %27 = sbr.rel (0) target = $region13
    $region12: #{tpu_custom_call.1} parent=1 // pred_region
      _
    $region13: #{tpu_custom_call.1} parent=1 // pred_fallthru
      _
    // Predicated region
    $region14: #{tpu_custom_call.1} parent=1 // pred_check
      _
    $region15: #{tpu_custom_call.1} parent=1 // pred_check_branch
      %29 = sbr.rel (0) target = $region17
    $region16: #{tpu_custom_call.1} parent=1 // pred_region
      _
    $region17: #{tpu_custom_call.1} parent=1 // pred_fallthru
      _
    // Predicated region
    $region18: #{tpu_custom_call.1} parent=1 // pred_check
      _
    $region19: #{tpu_custom_call.1} parent=1 // pred_check_branch
      %31 = sbr.rel (0) target = $region21
    $region20: #{tpu_custom_call.1} parent=1 // pred_region
      %33 = dma.done [#allocation4], 2048
    $region21: #{tpu_custom_call.1} parent=1 // pred_fallthru
      _
    %p34 = scmp.eq.s32.totalorder 0, 0
    // Predicated region
    $region22: #{tpu_custom_call.1} parent=1 // pred_check
      %p35 = pneg %p34
    $region23: #{tpu_custom_call.1} parent=1 // pred_check_branch
      %37 = sbr.rel (%p35) target = $region25
    $region24: #{tpu_custom_call.1} parent=1 // pred_region
      %38 = vst [vmem:[#allocation2] sm:$0xff] 0.0
    $region25: #{tpu_custom_call.1} parent=1 // pred_fallthru
      _
    %v39 = vld [vmem:[#allocation2] sm:$0xff]
    %v40 = vld [vmem:[%s0] sm:$0xff]
    %v41 = vld [vmem:[#allocation3] sm:$0xff]
    %v42 = vld [vmem:[#allocation3 + $0x8] sm:$0xff]
    %v43 = vld [vmem:[#allocation3 + $0x10] sm:$0xff]
    %v44 = vld [vmem:[#allocation3 + $0x18] sm:$0xff]
    %v45 = vld [vmem:[#allocation3 + $0x20] sm:$0xff]
    %v46 = vld [vmem:[#allocation3 + $0x28] sm:$0xff]
    %v47 = vld [vmem:[#allocation3 + $0x30] sm:$0xff]
    %v48 = vld [vmem:[#allocation3 + $0x38] sm:$0xff]
    %v49 = vld [vmem:[#allocation3 + $0x40] sm:$0xff]
    %v50 = vld [vmem:[#allocation3 + $0x48] sm:$0xff]
    %v51 = vld [vmem:[#allocation3 + $0x50] sm:$0xff]
    %v52 = vld [vmem:[#allocation3 + $0x58] sm:$0xff]
    %v53 = vld [vmem:[#allocation3 + $0x60] sm:$0xff]
    %v54 = vld [vmem:[#allocation3 + $0x68] sm:$0xff]
    %v55 = vld [vmem:[#allocation3 + $0x70] sm:$0xff]
    %v56 = vld [vmem:[#allocation3 + $0x78] sm:$0xff]
    %57 = vmatpush.xpose.msra.mxu0 %v56
    %58 = vmatpush.xpose.msra.mxu0 %v55
    %59 = vmatpush.xpose.msra.mxu0 %v54
    %60 = vmatpush.xpose.msra.mxu0 %v53
    %61 = vmatpush.xpose.msra.mxu0 %v52
    %62 = vmatpush.xpose.msra.mxu0 %v51
    %63 = vmatpush.xpose.msra.mxu0 %v50
    %64 = vmatpush.xpose.msra.mxu0 %v49
    %65 = vmatpush.xpose.msra.mxu0 %v48
    %66 = vmatpush.xpose.msra.mxu0 %v47
    %67 = vmatpush.xpose.msra.mxu0 %v46
    %68 = vmatpush.xpose.msra.mxu0 %v45
    %69 = vmatpush.xpose.msra.mxu0 %v44
    %70 = vmatpush.xpose.msra.mxu0 %v43
    %71 = vmatpush.xpose.msra.mxu0 %v42
    %72 = vmatpush.xpose.msra.mxu0 %v41
    %73 = vmatmul.f32.gmra.mxu0 %v40
    %v74 = vpop.f32.mrf.mxu0
    %v75 = vadd.f32 0.0, %v74
    %76 = vdwg.mxu0
    %v77 = vadd.f32 %v39, %v75
    %78 = vst [vmem:[#allocation2] sm:$0xff] %v77
    // Predicated region
    $region26: #{tpu_custom_call.1} parent=1 // pred_check
      %p79 = pneg %p34
    $region27: #{tpu_custom_call.1} parent=1 // pred_check_branch
      %81 = sbr.rel (%p79) target = $region29
    $region28: #{tpu_custom_call.1} parent=1 // pred_region
      %v82 = vld [vmem:[%s2] sm:$0xff]
      %v83 = vld [vmem:[%s3] sm:$0x1]
      %85 = vset.pattern.permute.xlu0 0
      %86 = vperm.xlu0 %85, %v82
      %v87 = vpop.permute.xlu0 %86
      %v90 = vperm.slane %v83, 0
      %v92 = vadd.f32 %v87, %v90
      %v93 = vld [vmem:[#allocation2] sm:$0xff]
      %v94 = vmul.f32 %v93, 2.0
      %v95 = vsub.f32 %v92, %v94
      %v96 = vmax.f32 %v95, 0.0
      %v97 = vrsqrt.pop %v96
      %v98 = vmul.f32 %v97, %v96
      %v99 = vmul.f32 %v98, %v97
      %v100 = vmul.f32 0.5, %v99
      %v101 = vsub.f32 1.5, %v100
      %v102 = vmul.f32 %v97, %v101
      %v103 = vmul.f32 %v96, %v102
      %vm104 = vcmp.eq.f32.partialorder %v96, inf
      %v105 = vsel %vm104, %v96, %v103
      %vm106 = vcmp.eq.f32.partialorder %v96, 0.0
      %v107 = vand.u32 %v96, 2147483648
      %v108 = vsel %vm106, %v107, %v105
      %109 = vst [vmem:[#allocation6] sm:$0xff] %v108
    $region29: #{tpu_custom_call.1} parent=1 // pred_fallthru
      _
    // Predicated region
    $region30: #{tpu_custom_call.1} parent=1 // pred_check
      _
    $region31: #{tpu_custom_call.1} parent=1 // pred_check_branch
      %111 = sbr.rel (0) target = $region33
    $region32: #{tpu_custom_call.1} parent=1 // pred_region
      %113 = vsyncadd [#allocation5], 0
      %s115 = sshll.u32 [#allocation6], 4
      %s116 = int_to_ptr.vmem [resolvable:$true] %s115
      %s117 = sshll.u32 %s4, 4
      %s118 = int_to_ptr.hbm [resolvable:$true] %s117
      %120 = dma.vmem_to_hbm [thread:$0]  %s116, 128, %s118, [#allocation5]
    $region33: #{tpu_custom_call.1} parent=1 // pred_fallthru
      _
    // Predicated region
    $region34: #{tpu_custom_call.1} parent=1 // pred_check
      _
    $region35: #{tpu_custom_call.1} parent=1 // pred_check_branch
      %122 = sbr.rel (0) target = $region37
    $region36: #{tpu_custom_call.1} parent=1 // pred_region
      %124 = dma.done [#allocation5], 128
    $region37: #{tpu_custom_call.1} parent=1 // pred_fallthru
      _
    %125 = vsyncpa [#allocation4], 1
    %126 = vsyncpa [#allocation5], 1

</llo_original>
